<compile_context>
chip_gen: v6e
topology: v6e:2x2x1
jax: 0.10.0
libtpu: 0.0.40
codegen_flags: <defaults>
</compile_context>

<pallas_src>
import functools

import jax
import jax.numpy as jnp
from jax.experimental import pallas as pl
from jax.experimental.pallas import tpu as pltpu


def _match_dtype(x, dtype):
    return x if x.dtype == dtype else x.astype(dtype)


def _rw_kernel(aff_ref, act_ref, out_ref):
    """aff_ref: (NB, TQ, P); act_ref: (NB, C, P); out_ref: (NB, C, TQ)."""
    nb = aff_ref.shape[0]
    for b in range(nb):                      # NB is small (<=8) and static
        a = aff_ref[b]                       # (TQ, P)  rows of A
        f = _match_dtype(act_ref[b], a.dtype)  # (C, P)  flattened activations
        # y[c, q] = sum_p f[c, p] * A[q, p].  LHS f is in natural (M, K)
        # orientation; RHS A contracts its last dim ("trans_b"), which the MXU
        # handles natively (same pattern as flash attention's Q @ K^T) -> the
        # big tile is never transposed and the result is already C-major.
        y = jax.lax.dot_general(
            f, a,
            dimension_numbers=(((1,), (1,)), ((), ())),
            preferred_element_type=jnp.float32,
        )                                    # (C, TQ) -- lane-dense store
        out_ref[b] = y.astype(out_ref.dtype)


def _rw_kernel_ktiled(aff_ref, act_ref, out_ref, acc_ref):
    """aff: (NB, TQ, TK); act: (NB, C, TK); out/acc: (NB, C, TQ). k is last axis."""
    k = pl.program_id(2)

    @pl.when(k == 0)
    def _():
        acc_ref[...] = jnp.zeros_like(acc_ref)

    nb = aff_ref.shape[0]
    for b in range(nb):
        a = aff_ref[b]                       # (TQ, TK)
        f = _match_dtype(act_ref[b], a.dtype)  # (C, TK)
        acc_ref[b] += jax.lax.dot_general(
            f, a,
            dimension_numbers=(((1,), (1,)), ((), ())),
            preferred_element_type=jnp.float32,
        )                                    # (C, TQ)

    @pl.when(k == pl.num_programs(2) - 1)
    def _():
        out_ref[...] = acc_ref[...].astype(out_ref.dtype)


def _vmem_budget():
    """Generation-aware (vmem_limit_bytes, per-A-buffer byte budget)."""
    try:
        cap = int(pltpu.get_tpu_info().vmem_capacity_bytes)
    except Exception:  # no info available -> assume the smallest (v7x) VMEM
        cap = 64 * 1024 * 1024
    # v7x (64 MiB): 56 MiB limit; v5e/v6e (128 MiB): 100 MiB limit.
    vmem_limit = max(min(cap - 8 * 1024 * 1024, 100 * 1024 * 1024),
                     32 * 1024 * 1024)
    # Two A buffers + output/activation buffers + Mosaic scratch must fit.
    a_budget = min(vmem_limit // 3, 20 * 1024 * 1024)
    return vmem_limit, a_budget


def _choose_tiles(n, p, itemsize, target_bytes):
    """Pick (NB samples/step, TQ rows of A/step, TK contraction tile or None)."""
    per_sample_a = p * p * itemsize

    if per_sample_a <= target_bytes:
        # Whole-sample A blocks; fuse a few samples per step (cap the unroll).
        nb = int(min(n, max(1, target_bytes // per_sample_a), 8))
        tq = p
        # Keep >= 2 grid steps so the second v7x TensorCore gets work.
        if (n + nb - 1) // nb < 2:
            if n >= 2:
                nb = (n + 1) // 2
            elif p >= 256:
                tq = max(128, (p // 2) // 128 * 128)
        return nb, int(tq), None

    # q-tile a single sample's A.  TQ must be a multiple of 128 because it is
    # the lane axis of the C-major output block (lane-dense stores).
    tq = (target_bytes // (p * itemsize)) // 128 * 128
    if tq >= 128:
        return 1, int(min(tq, p)), None

    # Very large P: even 128 rows of A exceed the budget -> also tile the
    # contraction (third, innermost "arbitrary" grid axis + f32 accumulator).
    tq = 128
    max_tk = (target_bytes // (tq * itemsize)) // 128 * 128
    tk, d = 0, 128
    while d <= min(max_tk, p):
        if p % d == 0:                       # avoid garbage in padded k-blocks
            tk = d
        d += 128
    if tk == 0:
        # No usable multiple-of-128 divisor of P: fall back to an untiled
        # contraction and let the (generous) VMEM limit absorb the slab.
        return 1, 128, None
    return 1, tq, int(tk)


@functools.partial(jax.jit, static_argnames=("mode", "block_target_bytes"))
def random_walk_forward(batch_aff, batch_activ, alpha=0.5, mode="single",
                        block_target_bytes=None):
    """batch_aff: (N, P, P) dense affinities; batch_activ: (N, C, W, H), P == W*H.

    Compute dtype follows batch_aff.dtype (pass bf16 affinities from the
    producer to halve HBM traffic); accumulation is always f32.
    """
    assert mode in ("single", "all")
    n, c, w, h = batch_activ.shape
    p = w * h
    assert batch_aff.shape == (n, p, p)
    out_dtype = batch_activ.dtype

    # Flatten spatial dims exactly like torch .reshape(N, C, W*H) (row-major).
    # TODO(synk): the (W,H)-flatten vs (H,W)-reshape convention is inherited
    # from the PyTorch reference; verify graph_to_tensors node order for W != H.
    act_flat = batch_activ.reshape(n, c, p)

    vmem_limit, auto_budget = _vmem_budget()
    target = int(block_target_bytes) if block_target_bytes is not None else auto_budget

    itemsize = batch_aff.dtype.itemsize
    nb, tq, tk = _choose_tiles(n, p, itemsize, target)

    cost = pl.CostEstimate(
        flops=2 * n * c * p * p,
        bytes_accessed=(n * p * p * itemsize                           # A
                        + n * c * p * act_flat.dtype.itemsize          # f
                        + n * c * p * jnp.dtype(out_dtype).itemsize),  # out
        transcendentals=0,
    )

    if tk is None:
        grid = (pl.cdiv(n, nb), pl.cdiv(p, tq))
        out_cq = pl.pallas_call(
            _rw_kernel,
            out_shape=jax.ShapeDtypeStruct((n, c, p), out_dtype),
            grid_spec=pltpu.PrefetchScalarGridSpec(
                num_scalar_prefetch=0,
                grid=grid,
                in_specs=[
                    pl.BlockSpec((nb, tq, p), lambda b, q: (b, q, 0)),   # A rows
                    # Activations: index_map independent of q -> VMEM-resident.
                    pl.BlockSpec((nb, c, p), lambda b, q: (b, 0, 0)),
                ],
                out_specs=pl.BlockSpec((nb, c, tq), lambda b, q: (b, 0, q)),
            ),
            compiler_params=pltpu.CompilerParams(
                dimension_semantics=("parallel", "parallel"),
                vmem_limit_bytes=vmem_limit),
            cost_estimate=cost,
        )(batch_aff, act_flat)
    else:
        grid = (pl.cdiv(n, nb), pl.cdiv(p, tq), p // tk)
        out_cq = pl.pallas_call(
            _rw_kernel_ktiled,
            out_shape=jax.ShapeDtypeStruct((n, c, p), out_dtype),
            grid_spec=pltpu.PrefetchScalarGridSpec(
                num_scalar_prefetch=0,
                grid=grid,
                in_specs=[
                    pl.BlockSpec((nb, tq, tk), lambda b, q, k: (b, q, k)),
                    pl.BlockSpec((nb, c, tk), lambda b, q, k: (b, 0, k)),
                ],
                out_specs=pl.BlockSpec((nb, c, tq), lambda b, q, k: (b, 0, q)),
                scratch_shapes=[pltpu.VMEM((nb, c, tq), jnp.float32)],
            ),
            compiler_params=pltpu.CompilerParams(
                dimension_semantics=("parallel", "parallel", "arbitrary"),
                vmem_limit_bytes=vmem_limit),
            cost_estimate=cost,
        )(batch_aff, act_flat)

    # Output is already C-major (N, C, P): only a free metadata reshape remains.
    return out_cq.reshape(n, c, h, w)


def _reference(batch_aff, batch_activ):
    n, c, w, h = batch_activ.shape
    p = w * h
    f_flat = batch_activ.reshape(n, c, p)
    return jnp.einsum("nqp,ncp->ncq",
                      batch_aff.astype(jnp.float32),
                      f_flat.astype(jnp.float32)).reshape(n, c, h, w)


if __name__ == "__main__":
    keys = jax.random.split(jax.random.PRNGKey(0), 8)

    def make_inputs(kA, kF, n, c, w, h, aff_dtype=jnp.float32):
        p = w * h
        aff = jax.random.uniform(kA, (n, p, p), dtype=jnp.float32)
        aff = aff / jnp.sum(aff, axis=-1, keepdims=True)
        aff = aff.astype(aff_dtype)          # cast at the *producer*, not in-kernel wrapper
        act = jax.random.normal(kF, (n, c, w, h), dtype=jnp.float32)
        return aff, act

    # --- Test 1: small P -> whole-sample A blocks, 2 grid steps (megacore) ---
    aff1, act1 = make_inputs(keys[0], keys[1], 2, 2, 16, 16)
    out1 = jax.block_until_ready(
        random_walk_forward(aff1, act1, alpha=0.5, mode="single"))
    ref1 = _reference(aff1, act1)
    assert out1.shape == (2, 2, 16, 16), out1.shape
    assert jnp.allclose(out1, ref1, atol=1e-4, rtol=1e-4), "f32 small-P mismatch"

    # --- Test 2: bf16 affinities produced upstream (halves A HBM traffic) ----
    aff1b = aff1.astype(jnp.bfloat16)
    out1b = jax.block_until_ready(random_walk_forward(aff1b, act1))
    ref1b = _reference(aff1b, act1)
    assert jnp.allclose(out1b, ref1b, atol=1e-2, rtol=1e-2), "bf16 mismatch"

    # --- Test 3: large P -> q-tiled path (big generation-aware A slabs) ------
    aff3, act3 = make_inputs(keys[2], keys[3], 1, 2, 64, 64)
    out3 = jax.block_until_ready(random_walk_forward(aff3, act3))
    ref3 = _reference(aff3, act3)
    assert jnp.allclose(out3, ref3, atol=1e-4, rtol=1e-4), "f32 large-P mismatch"

    # --- Test 4: force the k-tiled (contraction-split) path ------------------
    aff4, act4 = make_inputs(keys[4], keys[5], 1, 2, 32, 32)
    out4 = jax.block_until_ready(
        random_walk_forward(aff4, act4, block_target_bytes=256 * 1024))
    ref4 = _reference(aff4, act4)
    assert jnp.allclose(out4, ref4, atol=1e-4, rtol=1e-4), "k-tiled mismatch"

    # --- Test 5: batch-fused path with an odd batch (partial batch block) ----
    aff5, act5 = make_inputs(keys[6], keys[7], 5, 3, 8, 8)
    out5 = jax.block_until_ready(random_walk_forward(aff5, act5))
    ref5 = _reference(aff5, act5)
    assert jnp.allclose(out5, ref5, atol=1e-4, rtol=1e-4), "fused-batch mismatch"

    print("KERNEL_OK")
</pallas_src>

<mosaic_0001>
module attributes {stable_mosaic.version = 11 : i64} {
  func.func @_rw_kernel(%arg0: i32, %arg1: i32, %arg2: memref<1x256x256xf32, #tpu.memory_space<vmem>>, %arg3: memref<1x2x256xf32, #tpu.memory_space<vmem>>, %arg4: memref<1x2x256xf32, #tpu.memory_space<vmem>>) attributes {dimension_semantics = [#tpu.dimension_semantics<parallel>, #tpu.dimension_semantics<parallel>], iteration_bounds = array<i64: 2, 1>, scalar_prefetch = 0 : i64, scratch_operands = 0 : i64, tpu.core_type = #tpu.core_type<tc>, window_params = [{transform_indices = @transform_0, window_bounds = array<i64: 1, 256, 256>}, {transform_indices = @transform_1, window_bounds = array<i64: 1, 2, 256>}, {transform_indices = @transform_2, window_bounds = array<i64: 1, 2, 256>}]} {
    %c0 = arith.constant 0 : index
    %c0_0 = arith.constant 0 : index
    %c0_1 = arith.constant 0 : index
    %0 = vector.load %arg2[%c0, %c0_0, %c0_1] : memref<1x256x256xf32, #tpu.memory_space<vmem>>, vector<1x256x256xf32>
    %1 = vector.shape_cast %0 : vector<1x256x256xf32> to vector<256x256xf32>
    %c0_2 = arith.constant 0 : index
    %c0_3 = arith.constant 0 : index
    %c0_4 = arith.constant 0 : index
    %2 = vector.load %arg3[%c0_2, %c0_3, %c0_4] : memref<1x2x256xf32, #tpu.memory_space<vmem>>, vector<1x2x256xf32>
    %3 = vector.shape_cast %2 : vector<1x2x256xf32> to vector<2x256xf32>
    %cst = arith.constant dense<0.000000e+00> : vector<2x256xf32>
    %4 = tpu.matmul %3, %1, %cst {dimension_numbers = #tpu.dot_dimension_numbers<[1], [1], [0], [0], [0, 0, 1, 0], [], []>} : vector<2x256xf32>, vector<256x256xf32>, vector<2x256xf32> -> vector<2x256xf32>
    %c0_5 = arith.constant 0 : index
    %c0_6 = arith.constant 0 : index
    %c0_7 = arith.constant 0 : index
    %5 = vector.load %arg4[%c0_5, %c0_6, %c0_7] : memref<1x2x256xf32, #tpu.memory_space<vmem>>, vector<1x2x256xf32>
    %6 = vector.shape_cast %5 : vector<1x2x256xf32> to vector<2x256xf32>
    %7 = vector.shape_cast %4 : vector<2x256xf32> to vector<1x2x256xf32>
    tpu.vector_store %arg4[%c0_5, %c0_6, %c0_7], %7 {strides = array<i32>} : memref<1x2x256xf32, #tpu.memory_space<vmem>>, vector<1x2x256xf32>,
    return
  }
  func.func @transform_0(%arg0: i32, %arg1: i32) -> (i32, i32, i32) {
    %c0_i32 = arith.constant 0 : i32
    %c0_i32_0 = arith.constant 0 : i32
    return %arg0, %arg1, %c0_i32 : i32, i32, i32
  }
  func.func @transform_1(%arg0: i32, %arg1: i32) -> (i32, i32, i32) {
    %c0_i32 = arith.constant 0 : i32
    %c0_i32_0 = arith.constant 0 : i32
    %c0_i32_1 = arith.constant 0 : i32
    return %arg0, %c0_i32, %c0_i32_0 : i32, i32, i32
  }
  func.func @transform_2(%arg0: i32, %arg1: i32) -> (i32, i32, i32) {
    %c0_i32 = arith.constant 0 : i32
    %c0_i32_0 = arith.constant 0 : i32
    return %arg0, %c0_i32, %arg1 : i32, i32, i32
  }
}

</mosaic_0001>

<llo_original>
// kernel: random_walk_forward.1
$region0: #{random_walk_forward.1}
  #allocation0 [shape = 'u32[]', space=smem, size = 0x4, offset = 0x4, fixed_abs, tag = 'smem constant byte address 0x4 - core index']
  #allocation1 [shape = 'u32[144,128]{1,0:T(1,128)}', space=vmem, size = 0x12000, scoped, tag = 'internal scratch']
  %s0 = inlined_call_operand.hbm [shape: f32[2,256,256], index: 0, kind: input, shape index: {}]
  %s1 = inlined_call_operand.vmem [shape: f32[2,2,256], index: 1, kind: input, shape index: {}]
  %s2 = inlined_call_operand.vmem [shape: f32[2,2,256], index: 2, kind: output, shape index: {}]
  %s3 = sld [smem:[#allocation0]]
  $region45: #{random_walk_forward.1} parent=0
    _
  %s5 = ssub.s32 1, %s3
  %s6 = scalar_select 0, %s5, %s3
  $region1: #{random_walk_forward.1} parent=0
    #allocation2 [shape = 'u8[524288]{0}', space=vmem, size = 0x80000, scoped, tag = 'input window, operand 0']
    #allocation3 [shape = 's32[2]{0}', space=sflag, size = 0x8, scoped, tag = 'scoped memory for random_walk_forward.1']
    %7 = vsyncpa [#allocation3], 0
    %s8 = scalar_lea.sflag [#allocation3], 1
    %9 = vsyncpa %s8, 0
    loop: start=0, step=1, limit=4
    $region2: #{random_walk_forward.1} parent=1 // loop_pre_header
      _
    $region3: #{random_walk_forward.1} parent=1 // loop_header
      %s11 = sphi 0, %s15
      %p12 = scmp.ge.s32.totalorder %s11, 4
      %s18 = sphi 0, %s30
      %s19 = sphi 0, %s26
      %s20 = sphi 0, %s18
      %s21 = sphi 0, %s19
      %s22 = sphi 0, %s20
      %s23 = sphi 0, %s21
      %s35 = sphi 0, %s37
      %s38 = sphi 0, %s35
      %s39 = sphi 0, %s38
      %s55 = sphi 0, %s39
      %s61 = sphi 0, %s63
      %s64 = sphi 0, %s61
      %s65 = sphi 0, %s64
      %s81 = sphi 0, %s65
      %s89 = sphi 0, %s91
      %s92 = sphi 0, %s89
      %s93 = sphi 0, %s92
      %s109 = sphi 0, %s93
    $region4: #{random_walk_forward.1} parent=1 // loop_header_branch
      %14 = sbr.rel (%p12) target = $region8
    $region5: #{random_walk_forward.1} parent=1 // loop_body
      %s16 = ssub.s32 %s11, 1
      %s17 = ssub.s32 %s11, 2
      %s24 = sadd.s32 1, %s19
      %p25 = scmp.ge.s32.totalorder %s24, 1
      %s26 = scalar_select %p25, 0, %s24
      %s27 = sadd.s32 1, %s18
      %s28 = scalar_select %p25, %s27, %s18
      %p29 = scmp.ge.s32.totalorder %s28, 2
      %s30 = scalar_select %p29, 0, %s28
      %s31 = ssub.s32 %s18, %s30
      %s32 = ssub.s32 %s19, %s26
      %s33 = sor.u32 %s31, %s32
      %p34 = scmp.eq.s32.totalorder %s33, 0
      %s36 = sadd.s32 %s35, 1
      %s37 = scalar_select %p34, %s35, %s36
      %p40 = pneg %p34
      %p41 = scmp.eq.s32.totalorder %s11, 1
      %p42 = por %p40, %p41
      %p43 = scmp.ne.s32.totalorder %s35, %s38
      %p44 = scmp.eq.s32.totalorder %s11, 0
      %p45 = por %p43, %p44
      %p46 = scmp.ne.s32.totalorder %s35, %s38
      %p47 = scmp.eq.s32.totalorder %s16, 1
      %p48 = por %p46, %p47
      %p49 = scmp.ne.s32.totalorder %s38, %s39
      %p50 = scmp.eq.s32.totalorder %s16, 0
      %p51 = por %p49, %p50
      %p52 = scmp.ne.s32.totalorder %s38, %s39
      %p53 = scmp.eq.s32.totalorder %s17, 1
      %p54 = por %p52, %p53
      %p56 = scmp.ne.s32.totalorder %s39, %s55
      %p57 = scmp.eq.s32.totalorder %s17, 0
      %p58 = por %p56, %p57
      %s59 = ssub.s32 %s18, %s30
      %p60 = scmp.eq.s32.totalorder %s59, 0
      %s62 = sadd.s32 %s61, 1
      %s63 = scalar_select %p60, %s61, %s62
      %p66 = pneg %p60
      %p67 = scmp.eq.s32.totalorder %s11, 1
      %p68 = por %p66, %p67
      %p69 = scmp.ne.s32.totalorder %s61, %s64
      %p70 = scmp.eq.s32.totalorder %s11, 0
      %p71 = por %p69, %p70
      %p72 = scmp.ne.s32.totalorder %s61, %s64
      %p73 = scmp.eq.s32.totalorder %s16, 1
      %p74 = por %p72, %p73
      %p75 = scmp.ne.s32.totalorder %s64, %s65
      %p76 = scmp.eq.s32.totalorder %s16, 0
      %p77 = por %p75, %p76
      %p78 = scmp.ne.s32.totalorder %s64, %s65
      %p79 = scmp.eq.s32.totalorder %s17, 1
      %p80 = por %p78, %p79
      %p82 = scmp.ne.s32.totalorder %s65, %s81
      %p83 = scmp.eq.s32.totalorder %s17, 0
      %p84 = por %p82, %p83
      %s85 = ssub.s32 %s18, %s30
      %s86 = ssub.s32 %s19, %s26
      %s87 = sor.u32 %s85, %s86
      %p88 = scmp.eq.s32.totalorder %s87, 0
      %s90 = sadd.s32 %s89, 1
      %s91 = scalar_select %p88, %s89, %s90
      %p94 = pneg %p88
      %p95 = scmp.eq.s32.totalorder %s11, 1
      %p96 = por %p94, %p95
      %p97 = scmp.ne.s32.totalorder %s89, %s92
      %p98 = scmp.eq.s32.totalorder %s11, 0
      %p99 = por %p97, %p98
      %p100 = scmp.ne.s32.totalorder %s89, %s92
      %p101 = scmp.eq.s32.totalorder %s16, 1
      %p102 = por %p100, %p101
      %p103 = scmp.ne.s32.totalorder %s92, %s93
      %p104 = scmp.eq.s32.totalorder %s16, 0
      %p105 = por %p103, %p104
      %p106 = scmp.ne.s32.totalorder %s92, %s93
      %p107 = scmp.eq.s32.totalorder %s17, 1
      %p108 = por %p106, %p107
      %p110 = scmp.ne.s32.totalorder %s93, %s109
      %p111 = scmp.eq.s32.totalorder %s17, 0
      %p112 = por %p110, %p111
      %p113 = scmp.le.s32.totalorder 1, %s11
      %p114 = scmp.lt.s32.totalorder %s11, 3
      %p115 = pnand %p113, %p114
      %p116 = pneg %p115
      // Predicated region
      $region9: #{random_walk_forward.1} parent=5 // pred_check
        _
      $region10: #{random_walk_forward.1} parent=5 // pred_check_branch
        %118 = sbr.rel (%p115) target = $region12
      $region11: #{random_walk_forward.1} parent=5 // pred_region
        %s119 = ssub.s32 %s11, 1
      $region12: #{random_walk_forward.1} parent=5 // pred_fallthru
        _
      %p120 = scmp.lt.s32.totalorder %s11, 2
      // Predicated region
      $region13: #{random_walk_forward.1} parent=5 // pred_check
        %p121 = pneg %p120
      $region14: #{random_walk_forward.1} parent=5 // pred_check_branch
        %123 = sbr.rel (%p121) target = $region16
      $region15: #{random_walk_forward.1} parent=5 // pred_region
        // Predicated region
        $region17: #{random_walk_forward.1} parent=15 // pred_check
          %p124 = pneg %p45
        $region18: #{random_walk_forward.1} parent=15 // pred_check_branch
          %126 = sbr.rel (%p124) target = $region20
        $region19: #{random_walk_forward.1} parent=15 // pred_region
          %s127 = sand.u32 %s35, 1
          %s128 = scalar_lea.sflag [#allocation3], %s127
          %s129 = sand.u32 %s35, 1
          %s130 = smul.addr %s129, 512
          %s131 = scalar_lea.vmem [#allocation2], %s130
          %s132 = smul.u32 32, %s19
          %s134 = ssub.s32 8192, 8192
          %135 = vsyncadd %s128, %s134
          %s136 = smul.addr %s132, 2
          %s137 = smul.addr %s18, 64
          %s138 = sadd.s32 %s136, %s137
          %s139 = smul.addr %s138, 128
          %s140 = scalar_lea.hbm %s0, %s139
          %s141 = sshll.u32 %s131, 4
          %s142 = int_to_ptr.vmem [resolvable:$true] %s141
          %147 = dma.hbm_to_vmem [thread:$0]  %s140, 8192, %s142, %s128, 256, 256, 16
        $region20: #{random_walk_forward.1} parent=15 // pred_fallthru
          _
        // Predicated region
        $region21: #{random_walk_forward.1} parent=15 // pred_check
          %p148 = pneg %p71
        $region22: #{random_walk_forward.1} parent=15 // pred_check_branch
          %150 = sbr.rel (%p148) target = $region24
        $region23: #{random_walk_forward.1} parent=15 // pred_region
          %p151 = scmp.lt.s32.totalorder %s18, 1
          %s152 = scalar_select %p151, %s18, 1
          %s153 = smul.addr %s152, 2
          %s154 = smul.addr %s153, 2
          %s155 = scalar_lea.vmem %s1, %s154
        $region24: #{random_walk_forward.1} parent=15 // pred_fallthru
          _
      $region16: #{random_walk_forward.1} parent=5 // pred_fallthru
        _
      %p156 = scmp.le.s32.totalorder 1, %s11
      %p157 = scmp.lt.s32.totalorder %s11, 3
      %p158 = pnand %p156, %p157
      %p159 = pneg %p158
      // Predicated region
      $region25: #{random_walk_forward.1} parent=5 // pred_check
        _
      $region26: #{random_walk_forward.1} parent=5 // pred_check_branch
        %161 = sbr.rel (%p158) target = $region28
      $region27: #{random_walk_forward.1} parent=5 // pred_region
        %s162 = ssub.s32 %s11, 1
        %s163 = sand.u32 %s38, 1
        %s164 = scalar_lea.sflag [#allocation3], %s163
        %s165 = sand.u32 %s38, 1
        %s166 = smul.addr %s165, 512
        %s167 = scalar_lea.vmem [#allocation2], %s166
        // Predicated region
        $region29: #{random_walk_forward.1} parent=27 // pred_check
          %p168 = pneg %p51
        $region30: #{random_walk_forward.1} parent=27 // pred_check_branch
          %170 = sbr.rel (%p168) target = $region32
        $region31: #{random_walk_forward.1} parent=27 // pred_region
          %171 = dma.done %s164, 8192
        $region32: #{random_walk_forward.1} parent=27 // pred_fallthru
          _
        %s172 = sand.u32 %s38, 1
        %s173 = scalar_lea.sflag [#allocation3], %s172
        %s174 = sand.u32 %s38, 1
        %s175 = smul.addr %s174, 512
        %s176 = scalar_lea.vmem [#allocation2], %s175
        %p177 = pneg %p51
        %p178 = pneg %p48
        %p179 = scmp.lt.s32.totalorder %s20, 1
        %s180 = scalar_select %p179, %s20, 1
        %s181 = smul.addr %s180, 2
        %s182 = smul.addr %s181, 2
        %s183 = scalar_lea.vmem %s1, %s182
        %p184 = pneg %p77
        %p185 = pneg %p74
        %p186 = pneg %p105
        %p187 = pneg %p102
        %s188 = smul.u32 2, %s21
        %p189 = scmp.lt.s32.totalorder %s20, 1
        %s190 = scalar_select %p189, %s20, 1
        %p191 = scmp.lt.s32.totalorder %s188, 1
        %s192 = scalar_select %p191, %s188, 1
        %s193 = smul.addr %s190, 2
        %s194 = sadd.s32 %s192, %s193
        %s195 = smul.addr %s194, 2
        %s196 = scalar_lea.vmem %s2, %s195
        %s197 = smul.u32 32, %s21
        %p198 = scmp.lt.s32.totalorder %s20, 1
        %s199 = scalar_select %p198, %s20, 1
        %s200 = smul.addr %s199, 2
        %s201 = smul.addr %s200, 2
        %s202 = scalar_lea.vmem %s1, %s201
        %s203 = smul.u32 2, %s21
        %p204 = scmp.lt.s32.totalorder %s20, 1
        %s205 = scalar_select %p204, %s20, 1
        %p206 = scmp.lt.s32.totalorder %s203, 1
        %s207 = scalar_select %p206, %s203, 1
        %s208 = smul.addr %s205, 2
        %s209 = sadd.s32 %s207, %s208
        %s210 = smul.addr %s209, 2
        %s211 = scalar_lea.vmem %s2, %s210
        %s212 = smul.u32 2, %s21
        %v213 = vld [vmem:[%s167] sm:$0xff]
        %v214 = vld [vmem:[%s167 + $0x8] sm:$0xff]
        %v215 = vld [vmem:[%s167 + $0x10] sm:$0xff]
        %v216 = vld [vmem:[%s167 + $0x18] sm:$0xff]
        %v217 = vld [vmem:[%s167 + $0x20] sm:$0xff]
        %v218 = vld [vmem:[%s167 + $0x28] sm:$0xff]
        %v219 = vld [vmem:[%s167 + $0x30] sm:$0xff]
        %v220 = vld [vmem:[%s167 + $0x38] sm:$0xff]
        %v221 = vld [vmem:[%s167 + $0x40] sm:$0xff]
        %v222 = vld [vmem:[%s167 + $0x48] sm:$0xff]
        %v223 = vld [vmem:[%s167 + $0x50] sm:$0xff]
        %v224 = vld [vmem:[%s167 + $0x58] sm:$0xff]
        %v225 = vld [vmem:[%s167 + $0x60] sm:$0xff]
        %v226 = vld [vmem:[%s167 + $0x68] sm:$0xff]
        %v227 = vld [vmem:[%s167 + $0x70] sm:$0xff]
        %v228 = vld [vmem:[%s167 + $0x78] sm:$0xff]
        %v229 = vld [vmem:[%s167 + $0x80] sm:$0xff]
        %v230 = vld [vmem:[%s167 + $0x88] sm:$0xff]
        %v231 = vld [vmem:[%s167 + $0x90] sm:$0xff]
        %v232 = vld [vmem:[%s167 + $0x98] sm:$0xff]
        %v233 = vld [vmem:[%s167 + $0xa0] sm:$0xff]
        %v234 = vld [vmem:[%s167 + $0xa8] sm:$0xff]
        %v235 = vld [vmem:[%s167 + $0xb0] sm:$0xff]
        %v236 = vld [vmem:[%s167 + $0xb8] sm:$0xff]
        %v237 = vld [vmem:[%s167 + $0xc0] sm:$0xff]
        %v238 = vld [vmem:[%s167 + $0xc8] sm:$0xff]
        %v239 = vld [vmem:[%s167 + $0xd0] sm:$0xff]
        %v240 = vld [vmem:[%s167 + $0xd8] sm:$0xff]
        %v241 = vld [vmem:[%s167 + $0xe0] sm:$0xff]
        %v242 = vld [vmem:[%s167 + $0xe8] sm:$0xff]
        %v243 = vld [vmem:[%s167 + $0xf0] sm:$0xff]
        %v244 = vld [vmem:[%s167 + $0xf8] sm:$0xff]
        %v245 = vld [vmem:[%s167 + $0x100] sm:$0xff]
        %v246 = vld [vmem:[%s167 + $0x108] sm:$0xff]
        %v247 = vld [vmem:[%s167 + $0x110] sm:$0xff]
        %v248 = vld [vmem:[%s167 + $0x118] sm:$0xff]
        %v249 = vld [vmem:[%s167 + $0x120] sm:$0xff]
        %v250 = vld [vmem:[%s167 + $0x128] sm:$0xff]
        %v251 = vld [vmem:[%s167 + $0x130] sm:$0xff]
        %v252 = vld [vmem:[%s167 + $0x138] sm:$0xff]
        %v253 = vld [vmem:[%s167 + $0x140] sm:$0xff]
        %v254 = vld [vmem:[%s167 + $0x148] sm:$0xff]
        %v255 = vld [vmem:[%s167 + $0x150] sm:$0xff]
        %v256 = vld [vmem:[%s167 + $0x158] sm:$0xff]
        %v257 = vld [vmem:[%s167 + $0x160] sm:$0xff]
        %v258 = vld [vmem:[%s167 + $0x168] sm:$0xff]
        %v259 = vld [vmem:[%s167 + $0x170] sm:$0xff]
        %v260 = vld [vmem:[%s167 + $0x178] sm:$0xff]
        %v261 = vld [vmem:[%s167 + $0x180] sm:$0xff]
        %v262 = vld [vmem:[%s167 + $0x188] sm:$0xff]
        %v263 = vld [vmem:[%s167 + $0x190] sm:$0xff]
        %v264 = vld [vmem:[%s167 + $0x198] sm:$0xff]
        %v265 = vld [vmem:[%s167 + $0x1a0] sm:$0xff]
        %v266 = vld [vmem:[%s167 + $0x1a8] sm:$0xff]
        %v267 = vld [vmem:[%s167 + $0x1b0] sm:$0xff]
        %v268 = vld [vmem:[%s167 + $0x1b8] sm:$0xff]
        %v269 = vld [vmem:[%s167 + $0x1c0] sm:$0xff]
        %v270 = vld [vmem:[%s167 + $0x1c8] sm:$0xff]
        %v271 = vld [vmem:[%s167 + $0x1d0] sm:$0xff]
        %v272 = vld [vmem:[%s167 + $0x1d8] sm:$0xff]
        %v273 = vld [vmem:[%s167 + $0x1e0] sm:$0xff]
        %v274 = vld [vmem:[%s167 + $0x1e8] sm:$0xff]
        %v275 = vld [vmem:[%s167 + $0x1f0] sm:$0xff]
        %v276 = vld [vmem:[%s167 + $0x1f8] sm:$0xff]
        %v277 = vld [vmem:[%s202] sm:$0xf]
        %v280 = vunpack.c.l.s4 1983009808
        %v281 = vunpack.c.0.s8 %v280
        %v282 = vlaneseq
        %v283 = vshrl.u32 %v282, 7
        %v284 = vsub.s32 %v281, %v283
        %v285 = vrot.slane %v277, %v284
        %v286 = vcombine.high %v285, %v285
        %289 = vmatprep.subr.mxu0 %v244
        %290 = vmatpush1.xpose.msra.mxu0 %v243
        %291 = vmatprep.subr.mxu0 %v242
        %292 = vmatpush1.xpose.msra.mxu0 %v241
        %293 = vmatprep.subr.mxu0 %v240
        %294 = vmatpush1.xpose.msra.mxu0 %v239
        %295 = vmatprep.subr.mxu0 %v238
        %296 = vmatpush1.xpose.msra.mxu0 %v237
        %297 = vmatprep.subr.mxu0 %v236
        %298 = vmatpush1.xpose.msra.mxu0 %v235
        %299 = vmatprep.subr.mxu0 %v234
        %300 = vmatpush1.xpose.msra.mxu0 %v233
        %301 = vmatprep.subr.mxu0 %v232
        %302 = vmatpush1.xpose.msra.mxu0 %v231
        %303 = vmatprep.subr.mxu0 %v230
        %304 = vmatpush1.xpose.msra.mxu0 %v229
        %305 = vmatprep.subr.mxu0 %v228
        %306 = vmatpush1.xpose.msra.mxu0 %v227
        %307 = vmatprep.subr.mxu0 %v226
        %308 = vmatpush1.xpose.msra.mxu0 %v225
        %309 = vmatprep.subr.mxu0 %v224
        %310 = vmatpush1.xpose.msra.mxu0 %v223
        %311 = vmatprep.subr.mxu0 %v222
        %312 = vmatpush1.xpose.msra.mxu0 %v221
        %313 = vmatprep.subr.mxu0 %v220
        %314 = vmatpush1.xpose.msra.mxu0 %v219
        %315 = vmatprep.subr.mxu0 %v218
        %316 = vmatpush1.xpose.msra.mxu0 %v217
        %317 = vmatprep.subr.mxu0 %v216
        %318 = vmatpush1.xpose.msra.mxu0 %v215
        %319 = vmatprep.subr.mxu0 %v214
        %320 = vmatpush1.xpose.msra.mxu0 %v213
        %321 = vmatprep.subr.mxu0 %v276
        %322 = vmatpush2.xpose.msra.mxu0 %v275
        %323 = vmatprep.subr.mxu0 %v274
        %324 = vmatpush2.xpose.msra.mxu0 %v273
        %325 = vmatprep.subr.mxu0 %v272
        %326 = vmatpush2.xpose.msra.mxu0 %v271
        %327 = vmatprep.subr.mxu0 %v270
        %328 = vmatpush2.xpose.msra.mxu0 %v269
        %329 = vmatprep.subr.mxu0 %v268
        %330 = vmatpush2.xpose.msra.mxu0 %v267
        %331 = vmatprep.subr.mxu0 %v266
        %332 = vmatpush2.xpose.msra.mxu0 %v265
        %333 = vmatprep.subr.mxu0 %v264
        %334 = vmatpush2.xpose.msra.mxu0 %v263
        %335 = vmatprep.subr.mxu0 %v262
        %336 = vmatpush2.xpose.msra.mxu0 %v261
        %337 = vmatprep.subr.mxu0 %v260
        %338 = vmatpush2.xpose.msra.mxu0 %v259
        %339 = vmatprep.subr.mxu0 %v258
        %340 = vmatpush2.xpose.msra.mxu0 %v257
        %341 = vmatprep.subr.mxu0 %v256
        %342 = vmatpush2.xpose.msra.mxu0 %v255
        %343 = vmatprep.subr.mxu0 %v254
        %344 = vmatpush2.xpose.msra.mxu0 %v253
        %345 = vmatprep.subr.mxu0 %v252
        %346 = vmatpush2.xpose.msra.mxu0 %v251
        %347 = vmatprep.subr.mxu0 %v250
        %348 = vmatpush2.xpose.msra.mxu0 %v249
        %349 = vmatprep.subr.mxu0 %v248
        %350 = vmatpush2.xpose.msra.mxu0 %v247
        %351 = vmatprep.subr.mxu0 %v246
        %352 = vmatpush2.xpose.msra.mxu0 %v245
        %353 = vmatprep.mubr.f32.mxu0 %v286
        %354 = vmatmul.mubr.f32.gmra.mxu0 %v285
        %v355 = vpop.f32.mrf.mxu0
        %v356 = vadd.f32 0.0, %v355
        %v357 = vpop.f32.mrf.mxu0
        %v358 = vadd.f32 0.0, %v357
        %359 = vdwg.mxu0
        %v362 = vcombine.low %v356, %v358
        %v364 = vunpack.c.l.s4 1983009808
        %v365 = vunpack.c.0.s8 %v364
        %v366 = vlaneseq
        %v367 = vshrl.u32 %v366, 7
        %v368 = vsub.s32 %v365, %v367
        %v369 = vrot.slane %v362, %v368
        %371 = vst [vmem:[%s211] sm:$0xf] %v369
        %s372 = smul.u32 2, %s21
        %p373 = scmp.lt.s32.totalorder %s20, 1
        %s374 = scalar_select %p373, %s20, 1
        %p375 = scmp.lt.s32.totalorder %s372, 1
        %s376 = scalar_select %p375, %s372, 1
        %s377 = smul.addr %s374, 2
        %s378 = sadd.s32 %s376, %s377
        %s379 = smul.addr %s378, 2
        %s380 = scalar_lea.vmem %s2, %s379
        // Predicated region
        $region33: #{random_walk_forward.1} parent=27 // pred_check
          %p381 = pneg %p102
        $region34: #{random_walk_forward.1} parent=27 // pred_check_branch
          %383 = sbr.rel (%p381) target = $region36
        $region35: #{random_walk_forward.1} parent=27 // pred_region
          %s384 = smul.u32 2, %s21
        $region36: #{random_walk_forward.1} parent=27 // pred_fallthru
          _
      $region28: #{random_walk_forward.1} parent=5 // pred_fallthru
        _
      %p385 = scmp.le.s32.totalorder 2, %s11
      // Predicated region
      $region37: #{random_walk_forward.1} parent=5 // pred_check
        %p386 = pneg %p385
      $region38: #{random_walk_forward.1} parent=5 // pred_check_branch
        %388 = sbr.rel (%p386) target = $region40
      $region39: #{random_walk_forward.1} parent=5 // pred_region
        %s389 = ssub.s32 %s11, 2
        // Predicated region
        $region41: #{random_walk_forward.1} parent=39 // pred_check
          %p390 = pneg %p108
        $region42: #{random_walk_forward.1} parent=39 // pred_check_branch
          %392 = sbr.rel (%p390) target = $region44
        $region43: #{random_walk_forward.1} parent=39 // pred_region
          %s393 = smul.u32 2, %s23
          %p394 = scmp.lt.s32.totalorder %s22, 1
          %s395 = scalar_select %p394, %s22, 1
          %p396 = scmp.lt.s32.totalorder %s393, 1
          %s397 = scalar_select %p396, %s393, 1
          %s398 = smul.addr %s395, 2
          %s399 = sadd.s32 %s397, %s398
          %s400 = smul.addr %s399, 2
          %s401 = scalar_lea.vmem %s2, %s400
        $region44: #{random_walk_forward.1} parent=39 // pred_fallthru
          _
      $region40: #{random_walk_forward.1} parent=5 // pred_fallthru
        _
    $region6: #{random_walk_forward.1} parent=1 // loop_footer
      %s15 = sadd.s32 1, %s11
    $region7: #{random_walk_forward.1} parent=1 // loop_footer_branch
      %10 = sbr.rel target = $region3
    $region8: #{random_walk_forward.1} parent=1 // loop_exit
      _
    %402 = vsyncpa [#allocation3], 1
    %s403 = scalar_lea.sflag [#allocation3], 1
    %404 = vsyncpa %s403, 1

</llo_original>
